<compile_context>
chip_gen: v5e
topology: v5e:2x2
jax: 0.10.0
libtpu: 0.0.40
codegen_flags: <defaults>
</compile_context>

<pallas_src>
import functools

import jax
import jax.numpy as jnp
import numpy as np
from jax.experimental import pallas as pl
from jax.experimental.pallas import tpu as pltpu


def _round_up(x, m):
    return (x + m - 1) // m * m


def _lgm_kernel(feat_ref, label_ref, s0_ref, s1_ref, s2_ref, slog_ref,
                logits_ref, mlogits_ref, *, alpha):
    """Per-batch-tile kernel: pure (TB, Cp) elementwise work.

    feat_ref:   (TB, Cp) float32   (K == C, padded to Cp)
    label_ref:  (TB, 1)  int32
    s0/s1/s2/slog_ref: (1, Cp) float32 hoisted per-class statistics
    logits_ref / mlogits_ref: (TB, Cp) float32 outputs
    """
    f = feat_ref[...]                               # (TB, Cp)
    labels = label_ref[...]                         # (TB, 1) int32
    s0 = s0_ref[...]                                # (1, Cp)
    s1 = s1_ref[...]
    s2 = s2_ref[...]
    slog = slog_ref[...]

    # dist[b,c] = f^2*S0 - 2*f*S1 + S2   (the D reduction folded into S0/S1/S2)
    dist = (f * s0 - 2.0 * s1) * f + s2             # (TB, Cp)
    logits = -0.5 * (slog + dist)                   # (TB, Cp)

    tb, cp = dist.shape
    class_ids = jax.lax.broadcasted_iota(jnp.int32, (tb, cp), 1)
    sel = jnp.where(class_ids == labels, dist, 0.0)  # dist only at the label column

    logits_ref[...] = logits
    # margin_logits = -0.5*(slog + dist*(1 + alpha*onehot)) = logits - 0.5*alpha*dist*onehot
    mlogits_ref[...] = logits - (0.5 * alpha) * sel


def lgm_loss(feat, label, centers, log_covs, alpha, *,
             max_tile_b=512, vmem_budget_bytes=16 * 1024 * 1024):
    """Pallas wrapper for LGMLoss.forward -> (logits, margin_logits)."""
    B, K = feat.shape
    C, D = centers.shape
    # Reference broadcasting (B,K,1) - (1,C,D) requires K == C.
    assert K == C, "LGMLoss reference broadcasting requires feat_dim == num_classes"

    # ---- Hoisted per-class statistics, computed once: (C, D) -> (C,) ----
    inv_cov = jnp.exp(-log_covs.astype(jnp.float32))            # single EUP pass, no divides
    centers_f = centers.astype(jnp.float32)
    s0 = jnp.sum(inv_cov, axis=-1)                              # (C,)
    s1 = jnp.sum(centers_f * inv_cov, axis=-1)                  # (C,)
    s2 = jnp.sum(centers_f * centers_f * inv_cov, axis=-1)      # (C,)
    slog = jnp.sum(log_covs.astype(jnp.float32), axis=-1)       # (C,)

    # ---- Lane-dense padding of the class dim; batch tiling ----
    Cp = _round_up(C, 128)

    # 3 live (TB, Cp) f32 tiles (feat in + 2 outs), each double-buffered by Pallas.
    per_row_bytes = 6 * Cp * 4
    tb = min(max_tile_b, max(8, vmem_budget_bytes // per_row_bytes))
    tb = max(8, (tb // 8) * 8)
    tb = min(tb, _round_up(B, 8))
    Bp = _round_up(B, tb)

    feat_p = jnp.pad(feat.astype(jnp.float32), ((0, Bp - B), (0, Cp - K)))
    label_p = jnp.pad(label.astype(jnp.int32), (0, Bp - B)).reshape(Bp, 1)
    s0_p = jnp.pad(s0, (0, Cp - C)).reshape(1, Cp)
    s1_p = jnp.pad(s1, (0, Cp - C)).reshape(1, Cp)
    s2_p = jnp.pad(s2, (0, Cp - C)).reshape(1, Cp)
    slog_p = jnp.pad(slog, (0, Cp - C)).reshape(1, Cp)

    row_spec = pl.BlockSpec((tb, Cp), lambda i: (i, 0))          # tiled over batch
    lab_spec = pl.BlockSpec((tb, 1), lambda i: (i, 0))
    vec_spec = pl.BlockSpec((1, Cp), lambda i: (0, 0))           # resident across grid steps

    kernel = functools.partial(_lgm_kernel, alpha=float(alpha))

    logits_p, mlogits_p = pl.pallas_call(
        kernel,
        grid_spec=pl.GridSpec(
            grid=(Bp // tb,),
            in_specs=[row_spec, lab_spec, vec_spec, vec_spec, vec_spec, vec_spec],
            out_specs=[row_spec, row_spec],
        ),
        out_shape=(
            jax.ShapeDtypeStruct((Bp, Cp), jnp.float32),
            jax.ShapeDtypeStruct((Bp, Cp), jnp.float32),
        ),
        compiler_params=pltpu.CompilerParams(
            dimension_semantics=("parallel",),          # independent batch tiles (megacore)
            vmem_limit_bytes=32 * 1024 * 1024),
    )(feat_p, label_p, s0_p, s1_p, s2_p, slog_p)

    return logits_p[:B, :C], mlogits_p[:B, :C]


def _lgm_loss_ref(feat, label, centers, log_covs, alpha):
    """Pure-JAX reference mirroring the PyTorch code (diff/wdiff form)."""
    C = centers.shape[0]
    covs = jnp.exp(log_covs)                                  # (C, D)
    diff = feat[:, :, None] - centers[None, :, :]             # (B, C, D)
    wdiff = diff / covs[None, :, :]
    dist = jnp.sum(diff * wdiff, axis=-1)                     # (B, C)
    y_onehot = jax.nn.one_hot(label, C, dtype=jnp.float32) * alpha + 1.0
    margin_dist = dist * y_onehot
    slog = jnp.sum(log_covs, axis=-1)[None, :]
    return -0.5 * (slog + dist), -0.5 * (slog + margin_dist)


if __name__ == "__main__":
    # Small shapes consistent with the module; num_classes == feat_dim (see note).
    B = 16
    num_classes = 16
    feat_dim = 16
    alpha = 0.1

    key = jax.random.PRNGKey(0)
    k_feat, k_lab, k_cent = jax.random.split(key, 3)

    feat = jax.random.normal(k_feat, (B, feat_dim), dtype=jnp.float32)
    label = jax.random.randint(k_lab, (B,), 0, num_classes, dtype=jnp.int32)

    # Deterministic parameter init per __init__: centers ~ randn, log_covs = zeros.
    centers = jax.random.normal(k_cent, (num_classes, feat_dim), dtype=jnp.float32)
    log_covs = 0.1 * jax.random.normal(key, (num_classes, feat_dim), dtype=jnp.float32)

    ref_logits, ref_margin = _lgm_loss_ref(feat, label, centers, log_covs, alpha)

    # 1) default tiling (single batch tile for this small B)
    logits, margin_logits = lgm_loss(feat, label, centers, log_covs, alpha)
    jax.block_until_ready((logits, margin_logits))
    np.testing.assert_allclose(np.asarray(logits), np.asarray(ref_logits),
                               rtol=1e-5, atol=1e-4)
    np.testing.assert_allclose(np.asarray(margin_logits), np.asarray(ref_margin),
                               rtol=1e-5, atol=1e-4)

    # 2) force multiple grid steps to exercise the tiled / resident-stats path
    logits2, margin2 = lgm_loss(feat, label, centers, log_covs, alpha, max_tile_b=8)
    jax.block_until_ready((logits2, margin2))
    np.testing.assert_allclose(np.asarray(logits2), np.asarray(ref_logits),
                               rtol=1e-5, atol=1e-4)
    np.testing.assert_allclose(np.asarray(margin2), np.asarray(ref_margin),
                               rtol=1e-5, atol=1e-4)

    print("KERNEL_OK")
</pallas_src>

<mosaic_0001>
module attributes {stable_mosaic.version = 11 : i64} {
  func.func @_lgm_kernel(%arg0: i32, %arg1: memref<16x128xf32, #tpu.memory_space<vmem>>, %arg2: memref<16x1xi32, #tpu.memory_space<vmem>>, %arg3: memref<1x128xf32, #tpu.memory_space<vmem>>, %arg4: memref<1x128xf32, #tpu.memory_space<vmem>>, %arg5: memref<1x128xf32, #tpu.memory_space<vmem>>, %arg6: memref<1x128xf32, #tpu.memory_space<vmem>>, %arg7: memref<16x128xf32, #tpu.memory_space<vmem>>, %arg8: memref<16x128xf32, #tpu.memory_space<vmem>>) attributes {dimension_semantics = [#tpu.dimension_semantics<parallel>], iteration_bounds = array<i64: 1>, scalar_prefetch = 0 : i64, scratch_operands = 0 : i64, tpu.core_type = #tpu.core_type<tc>, window_params = [{transform_indices = @transform_0, window_bounds = array<i64: 16, 128>}, {transform_indices = @transform_1, window_bounds = array<i64: 16, 1>}, {pipeline_mode = #tpu.pipeline_mode<synchronous>, transform_indices = @transform_2, window_bounds = array<i64: 1, 128>}, {pipeline_mode = #tpu.pipeline_mode<synchronous>, transform_indices = @transform_3, window_bounds = array<i64: 1, 128>}, {pipeline_mode = #tpu.pipeline_mode<synchronous>, transform_indices = @transform_4, window_bounds = array<i64: 1, 128>}, {pipeline_mode = #tpu.pipeline_mode<synchronous>, transform_indices = @transform_5, window_bounds = array<i64: 1, 128>}, {transform_indices = @transform_6, window_bounds = array<i64: 16, 128>}, {transform_indices = @transform_7, window_bounds = array<i64: 16, 128>}]} {
    %c0 = arith.constant 0 : index
    %c0_0 = arith.constant 0 : index
    %0 = vector.load %arg1[%c0, %c0_0] : memref<16x128xf32, #tpu.memory_space<vmem>>, vector<16x128xf32>
    %c0_1 = arith.constant 0 : index
    %c0_2 = arith.constant 0 : index
    %1 = vector.load %arg2[%c0_1, %c0_2] : memref<16x1xi32, #tpu.memory_space<vmem>>, vector<16x1xi32>
    %c0_3 = arith.constant 0 : index
    %c0_4 = arith.constant 0 : index
    %2 = vector.load %arg3[%c0_3, %c0_4] : memref<1x128xf32, #tpu.memory_space<vmem>>, vector<1x128xf32>
    %c0_5 = arith.constant 0 : index
    %c0_6 = arith.constant 0 : index
    %3 = vector.load %arg4[%c0_5, %c0_6] : memref<1x128xf32, #tpu.memory_space<vmem>>, vector<1x128xf32>
    %c0_7 = arith.constant 0 : index
    %c0_8 = arith.constant 0 : index
    %4 = vector.load %arg5[%c0_7, %c0_8] : memref<1x128xf32, #tpu.memory_space<vmem>>, vector<1x128xf32>
    %c0_9 = arith.constant 0 : index
    %c0_10 = arith.constant 0 : index
    %5 = vector.load %arg6[%c0_9, %c0_10] : memref<1x128xf32, #tpu.memory_space<vmem>>, vector<1x128xf32>
    %6 = vector.broadcast %2 : vector<1x128xf32> to vector<16x128xf32>
    %7 = arith.mulf %0, %6 : vector<16x128xf32>
    %cst = arith.constant 2.000000e+00 : f32
    %8 = vector.broadcast %cst : f32 to vector<1x128xf32>
    %9 = arith.mulf %8, %3 : vector<1x128xf32>
    %10 = vector.broadcast %9 : vector<1x128xf32> to vector<16x128xf32>
    %11 = arith.subf %7, %10 : vector<16x128xf32>
    %12 = arith.mulf %11, %0 : vector<16x128xf32>
    %13 = vector.broadcast %4 : vector<1x128xf32> to vector<16x128xf32>
    %14 = arith.addf %12, %13 : vector<16x128xf32>
    %15 = vector.broadcast %5 : vector<1x128xf32> to vector<16x128xf32>
    %16 = arith.addf %15, %14 : vector<16x128xf32>
    %cst_11 = arith.constant -5.000000e-01 : f32
    %17 = vector.broadcast %cst_11 : f32 to vector<16x128xf32>
    %18 = arith.mulf %17, %16 : vector<16x128xf32>
    %19 = tpu.iota {dimensions = array<i32: 1>} : vector<16x128xi32>
    %20 = vector.broadcast %1 : vector<16x1xi32> to vector<16x128xi32>
    %21 = arith.cmpi eq, %19, %20 : vector<16x128xi32>
    %cst_12 = arith.constant 0.000000e+00 : f32
    %22 = vector.broadcast %cst_12 : f32 to vector<16x128xf32>
    %23 = arith.select %21, %14, %22 : vector<16x128xi1>, vector<16x128xf32>
    %c0_13 = arith.constant 0 : index
    %c0_14 = arith.constant 0 : index
    %24 = vector.load %arg7[%c0_13, %c0_14] : memref<16x128xf32, #tpu.memory_space<vmem>>, vector<16x128xf32>
    tpu.vector_store %arg7[%c0_13, %c0_14], %18 {strides = array<i32>} : memref<16x128xf32, #tpu.memory_space<vmem>>, vector<16x128xf32>,
    %cst_15 = arith.constant 5.000000e-02 : f32
    %25 = vector.broadcast %cst_15 : f32 to vector<16x128xf32>
    %26 = arith.mulf %25, %23 : vector<16x128xf32>
    %27 = arith.subf %18, %26 : vector<16x128xf32>
    %c0_16 = arith.constant 0 : index
    %c0_17 = arith.constant 0 : index
    %28 = vector.load %arg8[%c0_16, %c0_17] : memref<16x128xf32, #tpu.memory_space<vmem>>, vector<16x128xf32>
    tpu.vector_store %arg8[%c0_16, %c0_17], %27 {strides = array<i32>} : memref<16x128xf32, #tpu.memory_space<vmem>>, vector<16x128xf32>,
    return
  }
  func.func @transform_0(%arg0: i32) -> (i32, i32) {
    %c0_i32 = arith.constant 0 : i32
    %c0_i32_0 = arith.constant 0 : i32
    return %arg0, %c0_i32 : i32, i32
  }
  func.func @transform_1(%arg0: i32) -> (i32, i32) {
    %c0_i32 = arith.constant 0 : i32
    %c0_i32_0 = arith.constant 0 : i32
    return %arg0, %c0_i32 : i32, i32
  }
  func.func @transform_2(%arg0: i32) -> (i32, i32) {
    %c0_i32 = arith.constant 0 : i32
    %c0_i32_0 = arith.constant 0 : i32
    %c0_i32_1 = arith.constant 0 : i32
    return %c0_i32, %c0_i32_0 : i32, i32
  }
  func.func @transform_3(%arg0: i32) -> (i32, i32) {
    %c0_i32 = arith.constant 0 : i32
    %c0_i32_0 = arith.constant 0 : i32
    %c0_i32_1 = arith.constant 0 : i32
    return %c0_i32, %c0_i32_0 : i32, i32
  }
  func.func @transform_4(%arg0: i32) -> (i32, i32) {
    %c0_i32 = arith.constant 0 : i32
    %c0_i32_0 = arith.constant 0 : i32
    %c0_i32_1 = arith.constant 0 : i32
    return %c0_i32, %c0_i32_0 : i32, i32
  }
  func.func @transform_5(%arg0: i32) -> (i32, i32) {
    %c0_i32 = arith.constant 0 : i32
    %c0_i32_0 = arith.constant 0 : i32
    %c0_i32_1 = arith.constant 0 : i32
    return %c0_i32, %c0_i32_0 : i32, i32
  }
  func.func @transform_6(%arg0: i32) -> (i32, i32) {
    %c0_i32 = arith.constant 0 : i32
    %c0_i32_0 = arith.constant 0 : i32
    return %arg0, %c0_i32 : i32, i32
  }
  func.func @transform_7(%arg0: i32) -> (i32, i32) {
    %c0_i32 = arith.constant 0 : i32
    %c0_i32_0 = arith.constant 0 : i32
    return %arg0, %c0_i32 : i32, i32
  }
}

</mosaic_0001>

<llo_original>
// kernel: tpu_custom_call.1
$region0: #{tpu_custom_call.1}
  #allocation0 [shape = 'u32[]', space=smem, size = 0x4, offset = 0x4, fixed_abs, tag = 'smem constant byte address 0x4 - core index']
  #allocation1 [shape = 'u32[72,128]{1,0:T(1,128)}', space=vmem, size = 0x9000, scoped, tag = 'internal scratch']
  %s0 = inlined_call_operand.vmem [shape: f32[16,128], index: 0, kind: input, shape index: {}]
  %s1 = inlined_call_operand.vmem [shape: s32[16,1], index: 1, kind: input, shape index: {}]
  %s2 = inlined_call_operand.vmem [shape: f32[1,128], index: 2, kind: input, shape index: {}]
  %s3 = inlined_call_operand.vmem [shape: f32[1,128], index: 3, kind: input, shape index: {}]
  %s4 = inlined_call_operand.vmem [shape: f32[1,128], index: 4, kind: input, shape index: {}]
  %s5 = inlined_call_operand.vmem [shape: f32[1,128], index: 5, kind: input, shape index: {}]
  %s6 = inlined_call_operand.hbm [shape: f32[16,128], index: 6, kind: output, shape index: {0}]
  %s7 = inlined_call_operand.hbm [shape: f32[16,128], index: 7, kind: output, shape index: {1}]
  %8 = xla_tuple %s6, %s7
  %s9 = sld [smem:[#allocation0]]
  $region42: #{tpu_custom_call.1} parent=0
    _
  %s11 = ssub.s32 1, %s9
  %s12 = scalar_select 0, %s11, %s9
  $region1: #{tpu_custom_call.1} parent=0
    #allocation2 [shape = 'u8[8192]{0}', space=vmem, size = 0x2000, scoped, tag = 'output window, operand 0, single buffered']
    #allocation3 [shape = 's32[1]{0}', space=sflag, size = 0x4, scoped, tag = 'scoped memory for tpu_custom_call.1']
    #allocation4 [shape = 'u8[8192]{0}', space=vmem, size = 0x2000, scoped, tag = 'output window, operand 1, single buffered']
    #allocation5 [shape = 's32[1]{0}', space=sflag, size = 0x4, scoped, tag = 'scoped memory for tpu_custom_call.1']
    %13 = vsyncpa [#allocation3], 0
    %14 = vsyncpa [#allocation5], 0
    // Predicated region
    $region2: #{tpu_custom_call.1} parent=1 // pred_check
      _
    $region3: #{tpu_custom_call.1} parent=1 // pred_check_branch
      %16 = sbr.rel (0) target = $region5
    $region4: #{tpu_custom_call.1} parent=1 // pred_region
      _
    $region5: #{tpu_custom_call.1} parent=1 // pred_fallthru
      _
    // Predicated region
    $region6: #{tpu_custom_call.1} parent=1 // pred_check
      _
    $region7: #{tpu_custom_call.1} parent=1 // pred_check_branch
      %18 = sbr.rel (0) target = $region9
    $region8: #{tpu_custom_call.1} parent=1 // pred_region
      _
    $region9: #{tpu_custom_call.1} parent=1 // pred_fallthru
      _
    // Predicated region
    $region10: #{tpu_custom_call.1} parent=1 // pred_check
      _
    $region11: #{tpu_custom_call.1} parent=1 // pred_check_branch
      %20 = sbr.rel (0) target = $region13
    $region12: #{tpu_custom_call.1} parent=1 // pred_region
      _
    $region13: #{tpu_custom_call.1} parent=1 // pred_fallthru
      _
    // Predicated region
    $region14: #{tpu_custom_call.1} parent=1 // pred_check
      _
    $region15: #{tpu_custom_call.1} parent=1 // pred_check_branch
      %22 = sbr.rel (0) target = $region17
    $region16: #{tpu_custom_call.1} parent=1 // pred_region
      _
    $region17: #{tpu_custom_call.1} parent=1 // pred_fallthru
      _
    // Predicated region
    $region18: #{tpu_custom_call.1} parent=1 // pred_check
      _
    $region19: #{tpu_custom_call.1} parent=1 // pred_check_branch
      %24 = sbr.rel (0) target = $region21
    $region20: #{tpu_custom_call.1} parent=1 // pred_region
      _
    $region21: #{tpu_custom_call.1} parent=1 // pred_fallthru
      _
    // Predicated region
    $region22: #{tpu_custom_call.1} parent=1 // pred_check
      _
    $region23: #{tpu_custom_call.1} parent=1 // pred_check_branch
      %26 = sbr.rel (0) target = $region25
    $region24: #{tpu_custom_call.1} parent=1 // pred_region
      _
    $region25: #{tpu_custom_call.1} parent=1 // pred_fallthru
      _
    %v27 = vld [vmem:[%s0] sm:$0xff]
    %v28 = vld [vmem:[%s0 + $0x8] sm:$0xff]
    %v29 = vld [vmem:[%s1] sm:$0xff]
    %v30 = vld [vmem:[%s1 + $0x8] sm:$0xff]
    %v31 = vld [vmem:[%s2] sm:$0x1]
    %v32 = vld [vmem:[%s3] sm:$0x1]
    %v33 = vld [vmem:[%s4] sm:$0x1]
    %v34 = vld [vmem:[%s5] sm:$0x1]
    %v36 = vperm.slane %v31, 0
    %v38 = vmul.f32 %v27, %v36
    %v39 = vmul.f32 %v28, %v36
    %v40 = vmul.f32 %v32, 2.0
    %v42 = vperm.slane %v40, 0
    %v44 = vsub.f32 %v38, %v42
    %v45 = vsub.f32 %v39, %v42
    %v46 = vmul.f32 %v44, %v27
    %v47 = vmul.f32 %v45, %v28
    %v49 = vperm.slane %v33, 0
    %v51 = vadd.f32 %v46, %v49
    %v52 = vadd.f32 %v47, %v49
    %v54 = vperm.slane %v34, 0
    %v56 = vadd.f32 %v54, %v51
    %v57 = vadd.f32 %v54, %v52
    %v58 = vmul.f32 %v56, -0.5
    %v59 = vmul.f32 %v57, -0.5
    %v60 = vlaneseq
    %v61 = vand.u32 %v60, 127
    %62 = vset.pattern.permute.xlu0 0
    %63 = vperm.xlu0 %62, %v29
    %v64 = vpop.permute.xlu0 %63
    %65 = vset.pattern.permute.xlu0 0
    %66 = vperm.xlu0 %65, %v30
    %v67 = vpop.permute.xlu0 %66
    %vm68 = vcmp.eq.s32.totalorder %v61, %v64
    %vm69 = vcmp.eq.s32.totalorder %v61, %v67
    %v70 = vsel %vm68, %v51, 0.0
    %v71 = vsel %vm69, %v52, 0.0
    %72 = vst [vmem:[#allocation2] sm:$0xff] %v58
    %73 = vst [vmem:[#allocation2 + $0x8] sm:$0xff] %v59
    %v74 = vmul.f32 %v70, 0.05
    %v75 = vmul.f32 %v71, 0.05
    %v76 = vsub.f32 %v58, %v74
    %v77 = vsub.f32 %v59, %v75
    %78 = vst [vmem:[#allocation4] sm:$0xff] %v76
    %79 = vst [vmem:[#allocation4 + $0x8] sm:$0xff] %v77
    // Predicated region
    $region26: #{tpu_custom_call.1} parent=1 // pred_check
      _
    $region27: #{tpu_custom_call.1} parent=1 // pred_check_branch
      %81 = sbr.rel (0) target = $region29
    $region28: #{tpu_custom_call.1} parent=1 // pred_region
      %83 = vsyncadd [#allocation3], 0
      %s84 = sshll.u32 [#allocation2], 4
      %s85 = int_to_ptr.vmem [resolvable:$true] %s84
      %s86 = sshll.u32 %s6, 4
      %s87 = int_to_ptr.hbm [resolvable:$true] %s86
      %92 = dma.vmem_to_hbm [thread:$0]  %s85, 256, %s87, [#allocation3], 128, 128, 8
    $region29: #{tpu_custom_call.1} parent=1 // pred_fallthru
      _
    // Predicated region
    $region30: #{tpu_custom_call.1} parent=1 // pred_check
      _
    $region31: #{tpu_custom_call.1} parent=1 // pred_check_branch
      %94 = sbr.rel (0) target = $region33
    $region32: #{tpu_custom_call.1} parent=1 // pred_region
      %96 = vsyncadd [#allocation5], 0
      %s97 = sshll.u32 [#allocation4], 4
      %s98 = int_to_ptr.vmem [resolvable:$true] %s97
      %s99 = sshll.u32 %s7, 4
      %s100 = int_to_ptr.hbm [resolvable:$true] %s99
      %105 = dma.vmem_to_hbm [thread:$0]  %s98, 256, %s100, [#allocation5], 128, 128, 8
    $region33: #{tpu_custom_call.1} parent=1 // pred_fallthru
      _
    // Predicated region
    $region34: #{tpu_custom_call.1} parent=1 // pred_check
      _
    $region35: #{tpu_custom_call.1} parent=1 // pred_check_branch
      %107 = sbr.rel (0) target = $region37
    $region36: #{tpu_custom_call.1} parent=1 // pred_region
      %109 = dma.done [#allocation3], 256
    $region37: #{tpu_custom_call.1} parent=1 // pred_fallthru
      _
    // Predicated region
    $region38: #{tpu_custom_call.1} parent=1 // pred_check
      _
    $region39: #{tpu_custom_call.1} parent=1 // pred_check_branch
      %111 = sbr.rel (0) target = $region41
    $region40: #{tpu_custom_call.1} parent=1 // pred_region
      %113 = dma.done [#allocation5], 256
    $region41: #{tpu_custom_call.1} parent=1 // pred_fallthru
      _
    %114 = vsyncpa [#allocation3], 1
    %115 = vsyncpa [#allocation5], 1

</llo_original>
